<compile_context>
chip_gen: v6e
topology: v6e:2x2x1
jax: 0.10.0
libtpu: 0.0.40
codegen_flags: <defaults>
</compile_context>

<pallas_src>
import jax
import jax.numpy as jnp
from jax.experimental import pallas as pl
from jax.experimental.pallas import tpu as pltpu


def _affine_kernel(fc1_ref, x_ref, x1_ref):
    # fc1_ref: SMEM (2,) f32 = [a, b]; x_ref / x1_ref: (TM, C) VMEM tiles.
    a = fc1_ref[0]
    b = fc1_ref[1]
    # Compute in f32 (scalars stay f32 regardless of x dtype), cast on store.
    x1_ref[...] = (a * x_ref[...].astype(jnp.float32) + b).astype(x1_ref.dtype)


def _vmem_budget_bytes():
    """~50% of this generation's physical VMEM (v7x: 64 MiB/TC, v5e/v6e: 128 MiB)."""
    try:
        cap = pltpu.get_tpu_info().vmem_capacity_bytes
    except Exception:
        cap = 64 << 20  # conservative fallback (v7x per-TC size)
    return max(16 << 20, int(cap) // 2)


def _lane_dense_2d(n, d):
    """Internal 2D layout (R, C) with C a multiple of 128 (elementwise op, so
    any flattening is legal). Returns None if no lane-dense layout exists."""
    if d >= 128 and d % 128 == 0:
        return n, d
    total = n * d
    if total % 128 != 0:
        return None  # fall back to natural layout (masked partial stores)
    best_any, best_tall = None, None
    c = 128
    while c <= min(total, 16384):
        if total % c == 0:
            best_any = c
            r = total // c
            if r >= 16 and r % 8 == 0:
                best_tall = c  # prefer layouts that leave rows to tile/pipeline
        c += 128
    c = best_tall if best_tall is not None else best_any
    if c is None:
        return None
    return total // c, c


def _pick_block_rows(r, c, itemsize, max_tile_bytes):
    """Row tile TM: multiple of 8, divides r evenly, per-tile bytes <=
    max_tile_bytes, and enough grid steps for pipelining + megacore sharding."""
    if r <= 8 or r % 8 != 0:
        return r  # full-dim row block is always legal
    row_bytes = max(1, c * itemsize)
    total_bytes = r * row_bytes

    # (a) Per-tile byte ceiling (HBM-roofline sweet spot / VMEM budget).
    tm = min(r, max(8, max_tile_bytes // row_bytes))

    # (b) Never a single-step grid: >= 2 steps always (shards the "parallel"
    #     axis across both v7x TensorCores), >= 4 steps once the array is big
    #     enough that tiles stay >= ~1 MiB (engages the software pipeline).
    min_steps = 4 if total_bytes >= (4 << 20) else 2
    tm = min(tm, max(8, r // min_steps))

    # (c) Sublane multiple, then shrink to an even divisor of r (no partial blocks).
    tm -= tm % 8
    tm = max(tm, 8)
    while tm > 8 and r % tm != 0:
        tm -= 8
    return tm if r % tm == 0 else r


def simple_nn_forward(x, fc1, fc2, *, block_rows=None):
    """x: (N, D); fc1, fc2: (2,) f32. Returns (x1, x2) matching SimpleNN.forward."""
    n, d = x.shape
    itemsize = jnp.dtype(x.dtype).itemsize

    # Lane-dense internal layout for the elementwise kernel.
    ld = _lane_dense_2d(n, d)
    r, c = ld if ld is not None else (n, d)
    x2d = x.reshape(r, c) if (r, c) != (n, d) else x

    vmem_budget = _vmem_budget_bytes()
    max_tile_bytes = min(4 << 20, max(1 << 20, vmem_budget // 6))
    if block_rows is None:
        tm = _pick_block_rows(r, c, itemsize, max_tile_bytes)
    else:
        tm = block_rows
        assert tm == r or (tm % 8 == 0 and r % tm == 0), \
            "block_rows must equal the internal row count or tile it in multiples of 8"
    grid = (r // tm,)

    tile_bytes = tm * c * itemsize
    # 1 input + 1 output stream, double-buffered (4 tiles live) plus headroom,
    # clamped to the generation-aware budget.
    vmem_limit = int(min(vmem_budget, max(8 << 20, 6 * tile_bytes)))

    y2d = pl.pallas_call(
        _affine_kernel,
        out_shape=jax.ShapeDtypeStruct((r, c), x.dtype),
        grid=grid,
        in_specs=[
            pl.BlockSpec(memory_space=pltpu.MemorySpace.SMEM),  # fc1 scalars (f32)
            pl.BlockSpec((tm, c), lambda i: (i, 0)),            # x row tiles
        ],
        out_specs=pl.BlockSpec((tm, c), lambda i: (i, 0)),      # x1 row tiles
        compiler_params=pltpu.CompilerParams(
            dimension_semantics=("parallel",),
            vmem_limit_bytes=vmem_limit,
        ),
    )(fc1.astype(jnp.float32), x2d)
    x1 = y2d.reshape(n, d) if (r, c) != (n, d) else y2d

    # x2: affine of row 0 only (the torch loop breaks after the first row).
    # ~D floats of work, computed here (fused by XLA) rather than as a kernel
    # output, which would be a masked sub-8-sublane block resident across the
    # whole grid.
    a2 = fc2[0].astype(jnp.float32)
    b2 = fc2[1].astype(jnp.float32)
    x2 = (a2 * x[0].astype(jnp.float32) + b2).astype(x.dtype)[None, :]
    return x1, x2


if __name__ == "__main__":
    key = jax.random.PRNGKey(0)
    k0, k1 = jax.random.split(key)

    # Deterministic parameters, exactly as in SimpleNN.__init__.
    fc1 = jnp.array([1.2, 0.15], dtype=jnp.float32)
    fc2 = jnp.array([1.2, 0.15], dtype=jnp.float32)

    fwd = jax.jit(simple_nn_forward, static_argnames=("block_rows",))

    def check(x, x1, x2):
        ref_x1 = fc1[0] * x + fc1[1]
        ref_x2 = (fc2[0] * x[0] + fc2[1])[None, :]
        assert x1.shape == x.shape and x2.shape == (1, x.shape[1])
        assert jnp.allclose(x1, ref_x1, atol=1e-6)
        assert jnp.allclose(x2, ref_x2, atol=1e-6)

    # Production path: auto-picked tile (>= 2 grid steps -> pipelined, both TCs).
    N, D = 512, 256
    x = jax.random.normal(k0, (N, D), dtype=jnp.float32)
    x1, x2 = jax.block_until_ready(fwd(x, fc1, fc2))
    check(x, x1, x2)

    # Test-only multi-tile path (4 grid steps); not used for production sizing.
    x1_t, x2_t = jax.block_until_ready(fwd(x, fc1, fc2, block_rows=128))
    check(x, x1_t, x2_t)

    # Non-lane-dense D: the wrapper reshapes to a lane-dense internal layout.
    xb = jax.random.normal(k1, (512, 160), dtype=jnp.float32)
    x1_b, x2_b = jax.block_until_ready(fwd(xb, fc1, fc2))
    check(xb, x1_b, x2_b)

    print("KERNEL_OK")
</pallas_src>

<mosaic_0001>
module attributes {stable_mosaic.version = 11 : i64} {
  func.func @_affine_kernel(%arg0: i32, %arg1: memref<2xf32, #tpu.memory_space<smem>>, %arg2: memref<256x256xf32, #tpu.memory_space<vmem>>, %arg3: memref<256x256xf32, #tpu.memory_space<vmem>>) attributes {dimension_semantics = [#tpu.dimension_semantics<parallel>], iteration_bounds = array<i64: 2>, scalar_prefetch = 0 : i64, scratch_operands = 0 : i64, tpu.core_type = #tpu.core_type<tc>, window_params = [{transform_indices = @transform_0, window_bounds = array<i64: 2>}, {transform_indices = @transform_1, window_bounds = array<i64: 256, 256>}, {transform_indices = @transform_2, window_bounds = array<i64: 256, 256>}]} {
    %c0 = arith.constant 0 : index
    %0 = memref.load %arg1[%c0] : memref<2xf32, #tpu.memory_space<smem>>
    %c1 = arith.constant 1 : index
    %1 = memref.load %arg1[%c1] : memref<2xf32, #tpu.memory_space<smem>>
    %c0_0 = arith.constant 0 : index
    %c0_1 = arith.constant 0 : index
    %2 = vector.load %arg2[%c0_0, %c0_1] : memref<256x256xf32, #tpu.memory_space<vmem>>, vector<256x256xf32>
    %3 = vector.broadcast %0 : f32 to vector<256x256xf32>
    %4 = arith.mulf %3, %2 : vector<256x256xf32>
    %5 = vector.broadcast %1 : f32 to vector<256x256xf32>
    %6 = arith.addf %4, %5 : vector<256x256xf32>
    %c0_2 = arith.constant 0 : index
    %c0_3 = arith.constant 0 : index
    %7 = vector.load %arg3[%c0_2, %c0_3] : memref<256x256xf32, #tpu.memory_space<vmem>>, vector<256x256xf32>
    tpu.vector_store %arg3[%c0_2, %c0_3], %6 {strides = array<i32>} : memref<256x256xf32, #tpu.memory_space<vmem>>, vector<256x256xf32>,
    return
  }
  func.func @transform_0(%arg0: i32) -> i32 {
    %c0_i32 = arith.constant 0 : i32
    %c0_i32_0 = arith.constant 0 : i32
    return %c0_i32 : i32
  }
  func.func @transform_1(%arg0: i32) -> (i32, i32) {
    %c0_i32 = arith.constant 0 : i32
    %c0_i32_0 = arith.constant 0 : i32
    return %arg0, %c0_i32 : i32, i32
  }
  func.func @transform_2(%arg0: i32) -> (i32, i32) {
    %c0_i32 = arith.constant 0 : i32
    %c0_i32_0 = arith.constant 0 : i32
    return %arg0, %c0_i32 : i32, i32
  }
}

</mosaic_0001>

<llo_original>
// kernel: simple_nn_forward.1
$region0: #{simple_nn_forward.1}
  #allocation0 [shape = 'u32[]', space=smem, size = 0x4, offset = 0x4, fixed_abs, tag = 'smem constant byte address 0x4 - core index']
  #allocation1 [shape = 'u32[144,128]{1,0:T(1,128)}', space=vmem, size = 0x12000, scoped, tag = 'internal scratch']
  %s0 = inlined_call_operand.vmem [shape: f32[2], index: 0, kind: input, shape index: {}]
  %s1 = inlined_call_operand.hbm [shape: f32[512,256], index: 1, kind: input, shape index: {}]
  %s2 = inlined_call_operand.hbm [shape: f32[512,256], index: 2, kind: output, shape index: {}]
  %s3 = sld [smem:[#allocation0]]
  $region49: #{simple_nn_forward.1} parent=0
    _
  %s5 = ssub.s32 1, %s3
  %s6 = scalar_select 0, %s5, %s3
  $region1: #{simple_nn_forward.1} parent=0
    #allocation2 [shape = 'u8[512]{0}', space=smem, size = 0x200, scoped, tag = 'input window, operand 0, single buffered']
    #allocation3 [shape = 's32[2]{0}', space=sflag, size = 0x8, scoped, tag = 'scoped memory for simple_nn_forward.1']
    #allocation4 [shape = 's32[2]{0}', space=sflag, size = 0x8, scoped, tag = 'scoped memory for simple_nn_forward.1']
    #allocation5 [shape = 's32[2]{0}', space=sflag, size = 0x8, scoped, tag = 'scoped memory for simple_nn_forward.1']
    #allocation6 [shape = 'u8[524288]{0}', space=vmem, size = 0x80000, scoped, tag = 'input window, operand 1']
    #allocation7 [shape = 'u8[524288]{0}', space=vmem, size = 0x80000, scoped, tag = 'output window, operand 0']
    %7 = vsyncpa [#allocation5], 0
    %8 = vsyncpa [#allocation3], 0
    %s9 = scalar_lea.sflag [#allocation3], 1
    %10 = vsyncpa %s9, 0
    %11 = vsyncpa [#allocation4], 0
    %s12 = scalar_lea.sflag [#allocation4], 1
    %13 = vsyncpa %s12, 0
    loop: start=0, step=1, limit=4
    $region2: #{simple_nn_forward.1} parent=1 // loop_pre_header
      _
    $region3: #{simple_nn_forward.1} parent=1 // loop_header
      %s15 = sphi 0, %s19
      %p16 = scmp.ge.s32.totalorder %s15, 4
      %s23 = sphi 0, %s23
      %s25 = sphi 0, %s23
      %s26 = sphi 0, %s25
      %s40 = sphi 0, %s26
      %s46 = sphi 0, %s48
      %s49 = sphi 0, %s46
      %s50 = sphi 0, %s49
      %s66 = sphi 0, %s50
      %s72 = sphi 0, %s74
      %s75 = sphi 0, %s72
      %s76 = sphi 0, %s75
      %s92 = sphi 0, %s76
    $region4: #{simple_nn_forward.1} parent=1 // loop_header_branch
      %18 = sbr.rel (%p16) target = $region8
    $region5: #{simple_nn_forward.1} parent=1 // loop_body
      %s20 = ssub.s32 %s15, 1
      %s21 = ssub.s32 %s15, 2
      %s22 = sadd.s32 %s15, 1
      %s24 = sadd.s32 %s23, 1
      %p27 = scmp.eq.s32.totalorder %s15, 1
      %p28 = scmp.ne.s32.totalorder %s23, %s25
      %p29 = scmp.eq.s32.totalorder %s15, 0
      %p30 = por %p28, %p29
      %p31 = scmp.ne.s32.totalorder %s23, %s25
      %p32 = scmp.eq.s32.totalorder %s20, 1
      %p33 = por %p31, %p32
      %p34 = scmp.ne.s32.totalorder %s25, %s26
      %p35 = scmp.eq.s32.totalorder %s20, 0
      %p36 = por %p34, %p35
      %p37 = scmp.ne.s32.totalorder %s25, %s26
      %p38 = scmp.eq.s32.totalorder %s21, 1
      %p39 = por %p37, %p38
      %p41 = scmp.ne.s32.totalorder %s26, %s40
      %p42 = scmp.eq.s32.totalorder %s21, 0
      %p43 = por %p41, %p42
      %s44 = ssub.s32 %s15, %s22
      %p45 = scmp.eq.s32.totalorder %s44, 0
      %s47 = sadd.s32 %s46, 1
      %s48 = scalar_select %p45, %s46, %s47
      %p51 = pneg %p45
      %p52 = scmp.eq.s32.totalorder %s15, 1
      %p53 = por %p51, %p52
      %p54 = scmp.ne.s32.totalorder %s46, %s49
      %p55 = scmp.eq.s32.totalorder %s15, 0
      %p56 = por %p54, %p55
      %p57 = scmp.ne.s32.totalorder %s46, %s49
      %p58 = scmp.eq.s32.totalorder %s20, 1
      %p59 = por %p57, %p58
      %p60 = scmp.ne.s32.totalorder %s49, %s50
      %p61 = scmp.eq.s32.totalorder %s20, 0
      %p62 = por %p60, %p61
      %p63 = scmp.ne.s32.totalorder %s49, %s50
      %p64 = scmp.eq.s32.totalorder %s21, 1
      %p65 = por %p63, %p64
      %p67 = scmp.ne.s32.totalorder %s50, %s66
      %p68 = scmp.eq.s32.totalorder %s21, 0
      %p69 = por %p67, %p68
      %s70 = ssub.s32 %s15, %s22
      %p71 = scmp.eq.s32.totalorder %s70, 0
      %s73 = sadd.s32 %s72, 1
      %s74 = scalar_select %p71, %s72, %s73
      %p77 = pneg %p71
      %p78 = scmp.eq.s32.totalorder %s15, 1
      %p79 = por %p77, %p78
      %p80 = scmp.ne.s32.totalorder %s72, %s75
      %p81 = scmp.eq.s32.totalorder %s15, 0
      %p82 = por %p80, %p81
      %p83 = scmp.ne.s32.totalorder %s72, %s75
      %p84 = scmp.eq.s32.totalorder %s20, 1
      %p85 = por %p83, %p84
      %p86 = scmp.ne.s32.totalorder %s75, %s76
      %p87 = scmp.eq.s32.totalorder %s20, 0
      %p88 = por %p86, %p87
      %p89 = scmp.ne.s32.totalorder %s75, %s76
      %p90 = scmp.eq.s32.totalorder %s21, 1
      %p91 = por %p89, %p90
      %p93 = scmp.ne.s32.totalorder %s76, %s92
      %p94 = scmp.eq.s32.totalorder %s21, 0
      %p95 = por %p93, %p94
      %p96 = scmp.le.s32.totalorder 1, %s15
      %p97 = scmp.lt.s32.totalorder %s15, 3
      %p98 = pnand %p96, %p97
      %p99 = pneg %p98
      // Predicated region
      $region9: #{simple_nn_forward.1} parent=5 // pred_check
        _
      $region10: #{simple_nn_forward.1} parent=5 // pred_check_branch
        %101 = sbr.rel (%p98) target = $region12
      $region11: #{simple_nn_forward.1} parent=5 // pred_region
        %s102 = ssub.s32 %s15, 1
        // Predicated region
        $region13: #{simple_nn_forward.1} parent=11 // pred_check
          %p103 = pneg %p36
        $region14: #{simple_nn_forward.1} parent=11 // pred_check_branch
          %105 = sbr.rel (%p103) target = $region16
        $region15: #{simple_nn_forward.1} parent=11 // pred_region
          %s107 = ssub.s32 16, 16
          %108 = vsyncadd [#allocation5], %s107
          %s110 = sshll.u32 %s0, 4
          %s111 = int_to_ptr.vmem [resolvable:$true] %s110
          %113 = dma.vmem_to_smem %s111, 16, [#allocation2], [#allocation5]
        $region16: #{simple_nn_forward.1} parent=11 // pred_fallthru
          _
      $region12: #{simple_nn_forward.1} parent=5 // pred_fallthru
        _
      %p114 = scmp.lt.s32.totalorder %s15, 2
      // Predicated region
      $region17: #{simple_nn_forward.1} parent=5 // pred_check
        %p115 = pneg %p114
      $region18: #{simple_nn_forward.1} parent=5 // pred_check_branch
        %117 = sbr.rel (%p115) target = $region20
      $region19: #{simple_nn_forward.1} parent=5 // pred_region
        // Predicated region
        $region21: #{simple_nn_forward.1} parent=19 // pred_check
          %p118 = pneg %p56
        $region22: #{simple_nn_forward.1} parent=19 // pred_check_branch
          %120 = sbr.rel (%p118) target = $region24
        $region23: #{simple_nn_forward.1} parent=19 // pred_region
          %s121 = sand.u32 %s46, 1
          %s122 = scalar_lea.sflag [#allocation3], %s121
          %s123 = sand.u32 %s46, 1
          %s124 = smul.addr %s123, 512
          %s125 = scalar_lea.vmem [#allocation6], %s124
          %s126 = smul.u32 32, %s15
          %s128 = ssub.s32 8192, 8192
          %129 = vsyncadd %s122, %s128
          %s130 = smul.addr %s126, 2
          %s131 = smul.addr %s130, 128
          %s132 = scalar_lea.hbm %s1, %s131
          %s133 = sshll.u32 %s125, 4
          %s134 = int_to_ptr.vmem [resolvable:$true] %s133
          %139 = dma.hbm_to_vmem [thread:$0]  %s132, 8192, %s134, %s122, 256, 256, 16
        $region24: #{simple_nn_forward.1} parent=19 // pred_fallthru
          _
      $region20: #{simple_nn_forward.1} parent=5 // pred_fallthru
        _
      %p140 = scmp.le.s32.totalorder 1, %s15
      %p141 = scmp.lt.s32.totalorder %s15, 3
      %p142 = pnand %p140, %p141
      %p143 = pneg %p142
      // Predicated region
      $region25: #{simple_nn_forward.1} parent=5 // pred_check
        _
      $region26: #{simple_nn_forward.1} parent=5 // pred_check_branch
        %145 = sbr.rel (%p142) target = $region28
      $region27: #{simple_nn_forward.1} parent=5 // pred_region
        %s146 = ssub.s32 %s15, 1
        // Predicated region
        $region29: #{simple_nn_forward.1} parent=27 // pred_check
          %p147 = pneg %p36
        $region30: #{simple_nn_forward.1} parent=27 // pred_check_branch
          %149 = sbr.rel (%p147) target = $region32
        $region31: #{simple_nn_forward.1} parent=27 // pred_region
          %150 = dma.done [#allocation5], 16
        $region32: #{simple_nn_forward.1} parent=27 // pred_fallthru
          _
        %s151 = sand.u32 %s49, 1
        %s152 = scalar_lea.sflag [#allocation3], %s151
        %s153 = sand.u32 %s49, 1
        %s154 = smul.addr %s153, 512
        %s155 = scalar_lea.vmem [#allocation6], %s154
        // Predicated region
        $region33: #{simple_nn_forward.1} parent=27 // pred_check
          %p156 = pneg %p62
        $region34: #{simple_nn_forward.1} parent=27 // pred_check_branch
          %158 = sbr.rel (%p156) target = $region36
        $region35: #{simple_nn_forward.1} parent=27 // pred_region
          %159 = dma.done %s152, 8192
        $region36: #{simple_nn_forward.1} parent=27 // pred_fallthru
          _
        %160 = sfence
        %p161 = pneg %p36
        %p162 = pneg %p33
        %s163 = sand.u32 %s49, 1
        %s164 = scalar_lea.sflag [#allocation3], %s163
        %s165 = sand.u32 %s49, 1
        %s166 = smul.addr %s165, 512
        %s167 = scalar_lea.vmem [#allocation6], %s166
        %p168 = pneg %p62
        %p169 = pneg %p59
        %p170 = pneg %p88
        %p171 = pneg %p85
        %s172 = sand.u32 %s75, 1
        %s173 = scalar_lea.sflag [#allocation4], %s172
        %s174 = sand.u32 %s75, 1
        %s175 = smul.addr %s174, 512
        %s176 = scalar_lea.vmem [#allocation7], %s175
        %s177 = smul.u32 32, %s20
        %s178 = smul.u32 32, %s20
        %s179 = sld [smem:[#allocation2]]
        %s180 = sld [smem:[#allocation2 + $0x1]]
        %v181 = vld [vmem:[%s155] sm:$0xff]
        %v182 = vld [vmem:[%s155 + $0x8] sm:$0xff]
        %v183 = vld [vmem:[%s155 + $0x10] sm:$0xff]
        %v184 = vld [vmem:[%s155 + $0x18] sm:$0xff]
        %v185 = vld [vmem:[%s155 + $0x20] sm:$0xff]
        %v186 = vld [vmem:[%s155 + $0x28] sm:$0xff]
        %v187 = vld [vmem:[%s155 + $0x30] sm:$0xff]
        %v188 = vld [vmem:[%s155 + $0x38] sm:$0xff]
        %v189 = vld [vmem:[%s155 + $0x40] sm:$0xff]
        %v190 = vld [vmem:[%s155 + $0x48] sm:$0xff]
        %v191 = vld [vmem:[%s155 + $0x50] sm:$0xff]
        %v192 = vld [vmem:[%s155 + $0x58] sm:$0xff]
        %v193 = vld [vmem:[%s155 + $0x60] sm:$0xff]
        %v194 = vld [vmem:[%s155 + $0x68] sm:$0xff]
        %v195 = vld [vmem:[%s155 + $0x70] sm:$0xff]
        %v196 = vld [vmem:[%s155 + $0x78] sm:$0xff]
        %v197 = vld [vmem:[%s155 + $0x80] sm:$0xff]
        %v198 = vld [vmem:[%s155 + $0x88] sm:$0xff]
        %v199 = vld [vmem:[%s155 + $0x90] sm:$0xff]
        %v200 = vld [vmem:[%s155 + $0x98] sm:$0xff]
        %v201 = vld [vmem:[%s155 + $0xa0] sm:$0xff]
        %v202 = vld [vmem:[%s155 + $0xa8] sm:$0xff]
        %v203 = vld [vmem:[%s155 + $0xb0] sm:$0xff]
        %v204 = vld [vmem:[%s155 + $0xb8] sm:$0xff]
        %v205 = vld [vmem:[%s155 + $0xc0] sm:$0xff]
        %v206 = vld [vmem:[%s155 + $0xc8] sm:$0xff]
        %v207 = vld [vmem:[%s155 + $0xd0] sm:$0xff]
        %v208 = vld [vmem:[%s155 + $0xd8] sm:$0xff]
        %v209 = vld [vmem:[%s155 + $0xe0] sm:$0xff]
        %v210 = vld [vmem:[%s155 + $0xe8] sm:$0xff]
        %v211 = vld [vmem:[%s155 + $0xf0] sm:$0xff]
        %v212 = vld [vmem:[%s155 + $0xf8] sm:$0xff]
        %v213 = vld [vmem:[%s155 + $0x100] sm:$0xff]
        %v214 = vld [vmem:[%s155 + $0x108] sm:$0xff]
        %v215 = vld [vmem:[%s155 + $0x110] sm:$0xff]
        %v216 = vld [vmem:[%s155 + $0x118] sm:$0xff]
        %v217 = vld [vmem:[%s155 + $0x120] sm:$0xff]
        %v218 = vld [vmem:[%s155 + $0x128] sm:$0xff]
        %v219 = vld [vmem:[%s155 + $0x130] sm:$0xff]
        %v220 = vld [vmem:[%s155 + $0x138] sm:$0xff]
        %v221 = vld [vmem:[%s155 + $0x140] sm:$0xff]
        %v222 = vld [vmem:[%s155 + $0x148] sm:$0xff]
        %v223 = vld [vmem:[%s155 + $0x150] sm:$0xff]
        %v224 = vld [vmem:[%s155 + $0x158] sm:$0xff]
        %v225 = vld [vmem:[%s155 + $0x160] sm:$0xff]
        %v226 = vld [vmem:[%s155 + $0x168] sm:$0xff]
        %v227 = vld [vmem:[%s155 + $0x170] sm:$0xff]
        %v228 = vld [vmem:[%s155 + $0x178] sm:$0xff]
        %v229 = vld [vmem:[%s155 + $0x180] sm:$0xff]
        %v230 = vld [vmem:[%s155 + $0x188] sm:$0xff]
        %v231 = vld [vmem:[%s155 + $0x190] sm:$0xff]
        %v232 = vld [vmem:[%s155 + $0x198] sm:$0xff]
        %v233 = vld [vmem:[%s155 + $0x1a0] sm:$0xff]
        %v234 = vld [vmem:[%s155 + $0x1a8] sm:$0xff]
        %v235 = vld [vmem:[%s155 + $0x1b0] sm:$0xff]
        %v236 = vld [vmem:[%s155 + $0x1b8] sm:$0xff]
        %v237 = vld [vmem:[%s155 + $0x1c0] sm:$0xff]
        %v238 = vld [vmem:[%s155 + $0x1c8] sm:$0xff]
        %v239 = vld [vmem:[%s155 + $0x1d0] sm:$0xff]
        %v240 = vld [vmem:[%s155 + $0x1d8] sm:$0xff]
        %v241 = vld [vmem:[%s155 + $0x1e0] sm:$0xff]
        %v242 = vld [vmem:[%s155 + $0x1e8] sm:$0xff]
        %v243 = vld [vmem:[%s155 + $0x1f0] sm:$0xff]
        %v244 = vld [vmem:[%s155 + $0x1f8] sm:$0xff]
        %v245 = vstv %s179
        %v246 = vmul.f32 %v245, %v181
        %v247 = vmul.f32 %v245, %v182
        %v248 = vmul.f32 %v245, %v183
        %v249 = vmul.f32 %v245, %v184
        %v250 = vmul.f32 %v245, %v185
        %v251 = vmul.f32 %v245, %v186
        %v252 = vmul.f32 %v245, %v187
        %v253 = vmul.f32 %v245, %v188
        %v254 = vmul.f32 %v245, %v189
        %v255 = vmul.f32 %v245, %v190
        %v256 = vmul.f32 %v245, %v191
        %v257 = vmul.f32 %v245, %v192
        %v258 = vmul.f32 %v245, %v193
        %v259 = vmul.f32 %v245, %v194
        %v260 = vmul.f32 %v245, %v195
        %v261 = vmul.f32 %v245, %v196
        %v262 = vmul.f32 %v245, %v197
        %v263 = vmul.f32 %v245, %v198
        %v264 = vmul.f32 %v245, %v199
        %v265 = vmul.f32 %v245, %v200
        %v266 = vmul.f32 %v245, %v201
        %v267 = vmul.f32 %v245, %v202
        %v268 = vmul.f32 %v245, %v203
        %v269 = vmul.f32 %v245, %v204
        %v270 = vmul.f32 %v245, %v205
        %v271 = vmul.f32 %v245, %v206
        %v272 = vmul.f32 %v245, %v207
        %v273 = vmul.f32 %v245, %v208
        %v274 = vmul.f32 %v245, %v209
        %v275 = vmul.f32 %v245, %v210
        %v276 = vmul.f32 %v245, %v211
        %v277 = vmul.f32 %v245, %v212
        %v278 = vmul.f32 %v245, %v213
        %v279 = vmul.f32 %v245, %v214
        %v280 = vmul.f32 %v245, %v215
        %v281 = vmul.f32 %v245, %v216
        %v282 = vmul.f32 %v245, %v217
        %v283 = vmul.f32 %v245, %v218
        %v284 = vmul.f32 %v245, %v219
        %v285 = vmul.f32 %v245, %v220
        %v286 = vmul.f32 %v245, %v221
        %v287 = vmul.f32 %v245, %v222
        %v288 = vmul.f32 %v245, %v223
        %v289 = vmul.f32 %v245, %v224
        %v290 = vmul.f32 %v245, %v225
        %v291 = vmul.f32 %v245, %v226
        %v292 = vmul.f32 %v245, %v227
        %v293 = vmul.f32 %v245, %v228
        %v294 = vmul.f32 %v245, %v229
        %v295 = vmul.f32 %v245, %v230
        %v296 = vmul.f32 %v245, %v231
        %v297 = vmul.f32 %v245, %v232
        %v298 = vmul.f32 %v245, %v233
        %v299 = vmul.f32 %v245, %v234
        %v300 = vmul.f32 %v245, %v235
        %v301 = vmul.f32 %v245, %v236
        %v302 = vmul.f32 %v245, %v237
        %v303 = vmul.f32 %v245, %v238
        %v304 = vmul.f32 %v245, %v239
        %v305 = vmul.f32 %v245, %v240
        %v306 = vmul.f32 %v245, %v241
        %v307 = vmul.f32 %v245, %v242
        %v308 = vmul.f32 %v245, %v243
        %v309 = vmul.f32 %v245, %v244
        %v310 = vstv %s180
        %v311 = vadd.f32 %v246, %v310
        %v312 = vadd.f32 %v247, %v310
        %v313 = vadd.f32 %v248, %v310
        %v314 = vadd.f32 %v249, %v310
        %v315 = vadd.f32 %v250, %v310
        %v316 = vadd.f32 %v251, %v310
        %v317 = vadd.f32 %v252, %v310
        %v318 = vadd.f32 %v253, %v310
        %v319 = vadd.f32 %v254, %v310
        %v320 = vadd.f32 %v255, %v310
        %v321 = vadd.f32 %v256, %v310
        %v322 = vadd.f32 %v257, %v310
        %v323 = vadd.f32 %v258, %v310
        %v324 = vadd.f32 %v259, %v310
        %v325 = vadd.f32 %v260, %v310
        %v326 = vadd.f32 %v261, %v310
        %v327 = vadd.f32 %v262, %v310
        %v328 = vadd.f32 %v263, %v310
        %v329 = vadd.f32 %v264, %v310
        %v330 = vadd.f32 %v265, %v310
        %v331 = vadd.f32 %v266, %v310
        %v332 = vadd.f32 %v267, %v310
        %v333 = vadd.f32 %v268, %v310
        %v334 = vadd.f32 %v269, %v310
        %v335 = vadd.f32 %v270, %v310
        %v336 = vadd.f32 %v271, %v310
        %v337 = vadd.f32 %v272, %v310
        %v338 = vadd.f32 %v273, %v310
        %v339 = vadd.f32 %v274, %v310
        %v340 = vadd.f32 %v275, %v310
        %v341 = vadd.f32 %v276, %v310
        %v342 = vadd.f32 %v277, %v310
        %v343 = vadd.f32 %v278, %v310
        %v344 = vadd.f32 %v279, %v310
        %v345 = vadd.f32 %v280, %v310
        %v346 = vadd.f32 %v281, %v310
        %v347 = vadd.f32 %v282, %v310
        %v348 = vadd.f32 %v283, %v310
        %v349 = vadd.f32 %v284, %v310
        %v350 = vadd.f32 %v285, %v310
        %v351 = vadd.f32 %v286, %v310
        %v352 = vadd.f32 %v287, %v310
        %v353 = vadd.f32 %v288, %v310
        %v354 = vadd.f32 %v289, %v310
        %v355 = vadd.f32 %v290, %v310
        %v356 = vadd.f32 %v291, %v310
        %v357 = vadd.f32 %v292, %v310
        %v358 = vadd.f32 %v293, %v310
        %v359 = vadd.f32 %v294, %v310
        %v360 = vadd.f32 %v295, %v310
        %v361 = vadd.f32 %v296, %v310
        %v362 = vadd.f32 %v297, %v310
        %v363 = vadd.f32 %v298, %v310
        %v364 = vadd.f32 %v299, %v310
        %v365 = vadd.f32 %v300, %v310
        %v366 = vadd.f32 %v301, %v310
        %v367 = vadd.f32 %v302, %v310
        %v368 = vadd.f32 %v303, %v310
        %v369 = vadd.f32 %v304, %v310
        %v370 = vadd.f32 %v305, %v310
        %v371 = vadd.f32 %v306, %v310
        %v372 = vadd.f32 %v307, %v310
        %v373 = vadd.f32 %v308, %v310
        %v374 = vadd.f32 %v309, %v310
        %375 = vst [vmem:[%s176] sm:$0xff] %v311
        %376 = vst [vmem:[%s176 + $0x8] sm:$0xff] %v312
        %377 = vst [vmem:[%s176 + $0x10] sm:$0xff] %v313
        %378 = vst [vmem:[%s176 + $0x18] sm:$0xff] %v314
        %379 = vst [vmem:[%s176 + $0x20] sm:$0xff] %v315
        %380 = vst [vmem:[%s176 + $0x28] sm:$0xff] %v316
        %381 = vst [vmem:[%s176 + $0x30] sm:$0xff] %v317
        %382 = vst [vmem:[%s176 + $0x38] sm:$0xff] %v318
        %383 = vst [vmem:[%s176 + $0x40] sm:$0xff] %v319
        %384 = vst [vmem:[%s176 + $0x48] sm:$0xff] %v320
        %385 = vst [vmem:[%s176 + $0x50] sm:$0xff] %v321
        %386 = vst [vmem:[%s176 + $0x58] sm:$0xff] %v322
        %387 = vst [vmem:[%s176 + $0x60] sm:$0xff] %v323
        %388 = vst [vmem:[%s176 + $0x68] sm:$0xff] %v324
        %389 = vst [vmem:[%s176 + $0x70] sm:$0xff] %v325
        %390 = vst [vmem:[%s176 + $0x78] sm:$0xff] %v326
        %391 = vst [vmem:[%s176 + $0x80] sm:$0xff] %v327
        %392 = vst [vmem:[%s176 + $0x88] sm:$0xff] %v328
        %393 = vst [vmem:[%s176 + $0x90] sm:$0xff] %v329
        %394 = vst [vmem:[%s176 + $0x98] sm:$0xff] %v330
        %395 = vst [vmem:[%s176 + $0xa0] sm:$0xff] %v331
        %396 = vst [vmem:[%s176 + $0xa8] sm:$0xff] %v332
        %397 = vst [vmem:[%s176 + $0xb0] sm:$0xff] %v333
        %398 = vst [vmem:[%s176 + $0xb8] sm:$0xff] %v334
        %399 = vst [vmem:[%s176 + $0xc0] sm:$0xff] %v335
        %400 = vst [vmem:[%s176 + $0xc8] sm:$0xff] %v336
        %401 = vst [vmem:[%s176 + $0xd0] sm:$0xff] %v337
        %402 = vst [vmem:[%s176 + $0xd8] sm:$0xff] %v338
        %403 = vst [vmem:[%s176 + $0xe0] sm:$0xff] %v339
        %404 = vst [vmem:[%s176 + $0xe8] sm:$0xff] %v340
        %405 = vst [vmem:[%s176 + $0xf0] sm:$0xff] %v341
        %406 = vst [vmem:[%s176 + $0xf8] sm:$0xff] %v342
        %407 = vst [vmem:[%s176 + $0x100] sm:$0xff] %v343
        %408 = vst [vmem:[%s176 + $0x108] sm:$0xff] %v344
        %409 = vst [vmem:[%s176 + $0x110] sm:$0xff] %v345
        %410 = vst [vmem:[%s176 + $0x118] sm:$0xff] %v346
        %411 = vst [vmem:[%s176 + $0x120] sm:$0xff] %v347
        %412 = vst [vmem:[%s176 + $0x128] sm:$0xff] %v348
        %413 = vst [vmem:[%s176 + $0x130] sm:$0xff] %v349
        %414 = vst [vmem:[%s176 + $0x138] sm:$0xff] %v350
        %415 = vst [vmem:[%s176 + $0x140] sm:$0xff] %v351
        %416 = vst [vmem:[%s176 + $0x148] sm:$0xff] %v352
        %417 = vst [vmem:[%s176 + $0x150] sm:$0xff] %v353
        %418 = vst [vmem:[%s176 + $0x158] sm:$0xff] %v354
        %419 = vst [vmem:[%s176 + $0x160] sm:$0xff] %v355
        %420 = vst [vmem:[%s176 + $0x168] sm:$0xff] %v356
        %421 = vst [vmem:[%s176 + $0x170] sm:$0xff] %v357
        %422 = vst [vmem:[%s176 + $0x178] sm:$0xff] %v358
        %423 = vst [vmem:[%s176 + $0x180] sm:$0xff] %v359
        %424 = vst [vmem:[%s176 + $0x188] sm:$0xff] %v360
        %425 = vst [vmem:[%s176 + $0x190] sm:$0xff] %v361
        %426 = vst [vmem:[%s176 + $0x198] sm:$0xff] %v362
        %427 = vst [vmem:[%s176 + $0x1a0] sm:$0xff] %v363
        %428 = vst [vmem:[%s176 + $0x1a8] sm:$0xff] %v364
        %429 = vst [vmem:[%s176 + $0x1b0] sm:$0xff] %v365
        %430 = vst [vmem:[%s176 + $0x1b8] sm:$0xff] %v366
        %431 = vst [vmem:[%s176 + $0x1c0] sm:$0xff] %v367
        %432 = vst [vmem:[%s176 + $0x1c8] sm:$0xff] %v368
        %433 = vst [vmem:[%s176 + $0x1d0] sm:$0xff] %v369
        %434 = vst [vmem:[%s176 + $0x1d8] sm:$0xff] %v370
        %435 = vst [vmem:[%s176 + $0x1e0] sm:$0xff] %v371
        %436 = vst [vmem:[%s176 + $0x1e8] sm:$0xff] %v372
        %437 = vst [vmem:[%s176 + $0x1f0] sm:$0xff] %v373
        %438 = vst [vmem:[%s176 + $0x1f8] sm:$0xff] %v374
        %s439 = sand.u32 %s75, 1
        %s440 = scalar_lea.sflag [#allocation4], %s439
        %s441 = sand.u32 %s75, 1
        %s442 = smul.addr %s441, 512
        %s443 = scalar_lea.vmem [#allocation7], %s442
        // Predicated region
        $region37: #{simple_nn_forward.1} parent=27 // pred_check
          %p444 = pneg %p85
        $region38: #{simple_nn_forward.1} parent=27 // pred_check_branch
          %446 = sbr.rel (%p444) target = $region40
        $region39: #{simple_nn_forward.1} parent=27 // pred_region
          %s447 = smul.u32 32, %s20
          %s449 = ssub.s32 8192, 8192
          %450 = vsyncadd %s440, %s449
          %s451 = smul.addr %s447, 2
          %s452 = smul.addr %s451, 128
          %s453 = scalar_lea.hbm %s2, %s452
          %s454 = sshll.u32 %s443, 4
          %s455 = int_to_ptr.vmem [resolvable:$true] %s454
          %460 = dma.vmem_to_hbm [thread:$0]  %s455, 8192, %s453, %s440, 256, 256, 16
        $region40: #{simple_nn_forward.1} parent=27 // pred_fallthru
          _
      $region28: #{simple_nn_forward.1} parent=5 // pred_fallthru
        _
      %p461 = scmp.le.s32.totalorder 2, %s15
      // Predicated region
      $region41: #{simple_nn_forward.1} parent=5 // pred_check
        %p462 = pneg %p461
      $region42: #{simple_nn_forward.1} parent=5 // pred_check_branch
        %464 = sbr.rel (%p462) target = $region44
      $region43: #{simple_nn_forward.1} parent=5 // pred_region
        %s465 = ssub.s32 %s15, 2
        // Predicated region
        $region45: #{simple_nn_forward.1} parent=43 // pred_check
          %p466 = pneg %p91
        $region46: #{simple_nn_forward.1} parent=43 // pred_check_branch
          %468 = sbr.rel (%p466) target = $region48
        $region47: #{simple_nn_forward.1} parent=43 // pred_region
          %s469 = sand.u32 %s76, 1
          %s470 = scalar_lea.sflag [#allocation4], %s469
          %s471 = sand.u32 %s76, 1
          %s472 = smul.addr %s471, 512
          %s473 = scalar_lea.vmem [#allocation7], %s472
          %474 = dma.done %s470, 8192
        $region48: #{simple_nn_forward.1} parent=43 // pred_fallthru
          _
      $region44: #{simple_nn_forward.1} parent=5 // pred_fallthru
        _
    $region6: #{simple_nn_forward.1} parent=1 // loop_footer
      %s19 = sadd.s32 1, %s15
    $region7: #{simple_nn_forward.1} parent=1 // loop_footer_branch
      %14 = sbr.rel target = $region3
    $region8: #{simple_nn_forward.1} parent=1 // loop_exit
      _
    %475 = vsyncpa [#allocation3], 1
    %s476 = scalar_lea.sflag [#allocation3], 1
    %477 = vsyncpa %s476, 1
    %478 = vsyncpa [#allocation4], 1
    %s479 = scalar_lea.sflag [#allocation4], 1
    %480 = vsyncpa %s479, 1
    %481 = vsyncpa [#allocation5], 1
    %s482 = scalar_lea.sflag [#allocation5], 1
    %483 = vsyncpa %s482, 1

</llo_original>
